<compile_context>
chip_gen: v7x
topology: tpu7x:2x2x1
jax: 0.10.0
libtpu: 0.0.40
codegen_flags: <defaults>
</compile_context>

<pallas_src>
import math

import jax
import jax.numpy as jnp
from jax.experimental import pallas as pl
from jax.experimental.pallas import tpu as pltpu


def _mandelbrot_kernel(lmbda_ref, x_ref, o_ref):
    # x_ref block: (TB, TC); lmbda_ref block: (1, TC) -> broadcasts over the
    # sublane (row) axis.  Pure VPU elementwise work, kept in x's dtype.
    x = x_ref[...]
    lam = lmbda_ref[...]
    o_ref[...] = (lam * x * (1.0 - x)).astype(o_ref.dtype)


def _cdiv(a, b):
    return -(-a // b)


def _sublane_multiple(itemsize):
    # Packed-vreg native sublane counts: f32 -> 8, bf16 -> 16, int8/fp8 -> 32.
    return {4: 8, 2: 16, 1: 32}.get(itemsize, 8)


def _vmem_budgets():
    """(target_block_bytes, vmem_limit_bytes) sized for this chip's VMEM."""
    try:
        phys = int(pltpu.get_tpu_info().vmem_capacity_bytes)
    except Exception:
        phys = 64 * 1024 * 1024  # assume the smallest per-core VMEM (v7x)
    # 48 MiB scoped limit on v7x, 96 MiB on v5e/v6e (lifts v5e's 16 MiB default).
    vmem_limit = min((phys * 3) // 4, 96 * 1024 * 1024)
    # 4 x block (double-buffered in + out) must fit with headroom; the 12 MiB
    # cap keeps the worst case (4 x 12 = 48 MiB) inside v7x's 64 MiB physical
    # VMEM even if the capacity query is pessimistic/optimistic.
    block_bytes = min(vmem_limit // 5, 12 * 1024 * 1024)
    return block_bytes, vmem_limit


def mandelbrot_activation(x, lmbda, *, target_block_bytes=None, vmem_limit_bytes=None):
    """x: (N, C, H, W); lmbda: (H, W).  Returns lmbda * x * (1 - x)."""
    N, C, H, W = x.shape
    assert lmbda.shape == (H, W)
    # TODO(synk): only trailing-(H, W) lmbda broadcasting is supported here;
    # arbitrary right-aligned `shapes` (e.g. per-channel (C, 1, 1)) is not.

    if target_block_bytes is None or vmem_limit_bytes is None:
        auto_block, auto_limit = _vmem_budgets()
        if target_block_bytes is None:
            target_block_bytes = auto_block
        if vmem_limit_bytes is None:
            vmem_limit_bytes = auto_limit

    dtype = x.dtype
    itemsize = jnp.dtype(dtype).itemsize
    sub = _sublane_multiple(itemsize)

    rows = N * C
    cols = H * W
    # Pre-cast lmbda so the whole elementwise chain stays in x's dtype
    # (avoids promoting bf16 inputs to f32 -> 2x vreg traffic).
    lam_flat = lmbda.reshape(-1).astype(dtype)

    # --- lane-dense flattening: make the lane (last) dim a multiple of 128. ---
    k = 128 // math.gcd(cols, 128)
    if k > 1 and rows % k == 0:
        r, lane = rows // k, cols * k
        x2 = x.reshape(r, lane)
        lam2 = jnp.tile(lam_flat, k).reshape(1, lane)  # repeats every `cols` lanes
    else:
        # cols already 128-aligned (k == 1), or rows can't be folded evenly
        # (rare; falls back to masked partial stores, still correct).
        r, lane = rows, cols
        x2 = x.reshape(r, lane)
        lam2 = lam_flat.reshape(1, lane)

    # --- column (lane) tiling: only when even a minimal (sub x lane) slab
    # exceeds the block budget (huge H*W), so v7x's 64 MiB VMEM never OOMs. ---
    if lane > 128 and sub * lane * itemsize > target_block_bytes:
        tc = max(128, (target_block_bytes // (sub * itemsize)) // 128 * 128)
    else:
        tc = lane
    col_steps = _cdiv(lane, tc)

    # --- row (sublane) block sizing. ---
    if r <= sub:
        tb = r  # full-extent block (equals the array dim -> always legal)
    else:
        tb = (target_block_bytes // max(tc * itemsize, 1)) // sub * sub
        tb = min(max(tb, sub), r)
        row_steps = _cdiv(r, tb)
        # Give v7x's two TensorCores >= 2 pipelined blocks each when the row
        # extent allows it (near-neutral on single-TC v5e/v6e).
        if row_steps * col_steps < 4 and r >= 4 * sub:
            tb = max(sub, (r // 4) // sub * sub)
        # Prefer (a) a tb that divides r -> no masked tail block, and
        # (b) an even total step count -> balanced split across v7x's 2 TCs.
        # Search a few nearby sublane multiples; largest block wins ties.
        if sub <= tb < r:
            cands = range(tb, max(sub, tb - 8 * sub) - 1, -sub)

            def _score(b):
                steps = _cdiv(r, b) * col_steps
                return (r % b == 0, steps % 2 == 0, b)

            tb = max(cands, key=_score)

    grid = (_cdiv(r, tb), col_steps)

    cost = pl.CostEstimate(
        flops=3 * r * lane,                               # sub + 2 mul per element
        transcendentals=0,
        bytes_accessed=(2 * r * lane + lane) * itemsize,  # read x + write out + lmbda
    )

    out2 = pl.pallas_call(
        _mandelbrot_kernel,
        out_shape=jax.ShapeDtypeStruct((r, lane), dtype),
        grid_spec=pltpu.PrefetchScalarGridSpec(
            num_scalar_prefetch=0,
            grid=grid,
            in_specs=[
                # lmbda: (1, tc) row; block index ignores the row axis, so it
                # is only re-fetched when the column block changes (usually
                # never -> resident in VMEM for the whole grid).
                pl.BlockSpec((1, tc), lambda i, j: (0, j)),
                # x: (tb, tc) lane-dense slab per grid step.
                pl.BlockSpec((tb, tc), lambda i, j: (i, j)),
            ],
            out_specs=pl.BlockSpec((tb, tc), lambda i, j: (i, j)),
        ),
        compiler_params=pltpu.CompilerParams(
            dimension_semantics=("parallel", "parallel"),
            vmem_limit_bytes=int(vmem_limit_bytes),
        ),
        cost_estimate=cost,
    )(lam2, x2)

    return out2.reshape(N, C, H, W)


if __name__ == "__main__":
    key = jax.random.PRNGKey(0)
    k_lmbda, k_x = jax.random.split(key)

    N, C, H, W = 2, 4, 16, 16

    # Deterministic parameter init mirroring torch.randn(shapes) * 0.25 + 0.5
    lmbda = jax.random.normal(k_lmbda, (H, W), dtype=jnp.float32) * 0.25 + 0.5
    x = jax.random.normal(k_x, (N, C, H, W), dtype=jnp.float32)

    out = mandelbrot_activation(x, lmbda)
    out = jax.block_until_ready(out)

    # Reference check in plain JAX (same broadcasting as PyTorch).
    ref = lmbda * x * (1.0 - x)
    assert out.shape == x.shape
    assert jnp.allclose(out, ref, atol=1e-6, rtol=1e-6)

    print("KERNEL_OK")
</pallas_src>

<mosaic_0001>
module attributes {stable_mosaic.version = 11 : i64} {
  func.func @_mandelbrot_kernel(%arg0: i32, %arg1: i32, %arg2: memref<1x256xf32, #tpu.memory_space<vmem>>, %arg3: memref<8x256xf32, #tpu.memory_space<vmem>>, %arg4: memref<8x256xf32, #tpu.memory_space<vmem>>) attributes {dimension_semantics = [#tpu.dimension_semantics<parallel>, #tpu.dimension_semantics<parallel>], iteration_bounds = array<i64: 1, 1>, scalar_prefetch = 0 : i64, scratch_operands = 0 : i64, tpu.core_type = #tpu.core_type<tc>, window_params = [{transform_indices = @transform_0, window_bounds = array<i64: 1, 256>}, {transform_indices = @transform_1, window_bounds = array<i64: 8, 256>}, {transform_indices = @transform_2, window_bounds = array<i64: 8, 256>}]} {
    %c0 = arith.constant 0 : index
    %c0_0 = arith.constant 0 : index
    %0 = vector.load %arg3[%c0, %c0_0] : memref<8x256xf32, #tpu.memory_space<vmem>>, vector<8x256xf32>
    %c0_1 = arith.constant 0 : index
    %c0_2 = arith.constant 0 : index
    %1 = vector.load %arg2[%c0_1, %c0_2] : memref<1x256xf32, #tpu.memory_space<vmem>>, vector<1x256xf32>
    %2 = vector.broadcast %1 : vector<1x256xf32> to vector<8x256xf32>
    %3 = arith.mulf %2, %0 : vector<8x256xf32>
    %cst = arith.constant 1.000000e+00 : f32
    %4 = vector.broadcast %cst : f32 to vector<8x256xf32>
    %5 = arith.subf %4, %0 : vector<8x256xf32>
    %6 = arith.mulf %3, %5 : vector<8x256xf32>
    %c0_3 = arith.constant 0 : index
    %c0_4 = arith.constant 0 : index
    %7 = vector.load %arg4[%c0_3, %c0_4] : memref<8x256xf32, #tpu.memory_space<vmem>>, vector<8x256xf32>
    tpu.vector_store %arg4[%c0_3, %c0_4], %6 {strides = array<i32>} : memref<8x256xf32, #tpu.memory_space<vmem>>, vector<8x256xf32>,
    return
  }
  func.func @transform_0(%arg0: i32, %arg1: i32) -> (i32, i32) {
    %c0_i32 = arith.constant 0 : i32
    %c0_i32_0 = arith.constant 0 : i32
    return %c0_i32, %arg1 : i32, i32
  }
  func.func @transform_1(%arg0: i32, %arg1: i32) -> (i32, i32) {
    %c0_i32 = arith.constant 0 : i32
    return %arg0, %arg1 : i32, i32
  }
  func.func @transform_2(%arg0: i32, %arg1: i32) -> (i32, i32) {
    %c0_i32 = arith.constant 0 : i32
    return %arg0, %arg1 : i32, i32
  }
}

</mosaic_0001>

<llo_original>
// kernel: tpu_custom_call.1
$region0: #{tpu_custom_call.1}
  #allocation0 [shape = 'u32[]', space=smem, size = 0x4, offset = 0x4, fixed_abs, tag = 'smem constant byte address 0x4 - core index']
  #allocation1 [shape = 'u32[144,128]{1,0:T(1,128)}', space=vmem, size = 0x12000, scoped, tag = 'internal scratch']
  %s0 = inlined_call_operand.hbm [shape: f32[1,256], index: 0, kind: input, shape index: {}]
  %s1 = inlined_call_operand.hbm [shape: f32[8,256], index: 1, kind: input, shape index: {}]
  %s2 = inlined_call_operand.hbm [shape: f32[8,256], index: 2, kind: output, shape index: {}]
  %s3 = sld [smem:[#allocation0]]
  $region26: #{tpu_custom_call.1} parent=0
    _
  %s5 = ssub.s32 1, %s3
  %s6 = scalar_select 0, %s5, %s3
  $region1: #{tpu_custom_call.1} parent=0
    #allocation2 [shape = 'u8[1024]{0}', space=vmem, size = 0x400, scoped, tag = 'input window, operand 0, single buffered']
    #allocation3 [shape = 's32[1]{0}', space=sflag, size = 0x4, scoped, tag = 'scoped memory for tpu_custom_call.1']
    #allocation4 [shape = 's32[1]{0}', space=sflag, size = 0x4, scoped, tag = 'scoped memory for tpu_custom_call.1']
    #allocation5 [shape = 'u8[8192]{0}', space=vmem, size = 0x2000, scoped, tag = 'input window, operand 1, single buffered']
    #allocation6 [shape = 's32[1]{0}', space=sflag, size = 0x4, scoped, tag = 'scoped memory for tpu_custom_call.1']
    #allocation7 [shape = 'u8[8192]{0}', space=vmem, size = 0x2000, scoped, tag = 'output window, operand 0, single buffered']
    %7 = vsyncpa [#allocation3], 0
    %8 = vsyncpa [#allocation6], 0
    %9 = vsyncpa [#allocation4], 0
    // Predicated region
    $region2: #{tpu_custom_call.1} parent=1 // pred_check
      _
    $region3: #{tpu_custom_call.1} parent=1 // pred_check_branch
      %11 = sbr.rel (0) target = $region5
    $region4: #{tpu_custom_call.1} parent=1 // pred_region
      %s13 = ssub.s32 32, 32
      %14 = vsyncadd [#allocation3], %s13
      %s16 = sshll.u32 [#allocation2], 4
      %s17 = int_to_ptr.vmem [resolvable:$true] %s16
      %19 = dma.hbm_to_vmem [thread:$0]  %s0, 32, %s17, [#allocation3]
    $region5: #{tpu_custom_call.1} parent=1 // pred_fallthru
      _
    // Predicated region
    $region6: #{tpu_custom_call.1} parent=1 // pred_check
      _
    $region7: #{tpu_custom_call.1} parent=1 // pred_check_branch
      %21 = sbr.rel (0) target = $region9
    $region8: #{tpu_custom_call.1} parent=1 // pred_region
      %s23 = ssub.s32 256, 256
      %24 = vsyncadd [#allocation6], %s23
      %s26 = sshll.u32 [#allocation5], 4
      %s27 = int_to_ptr.vmem [resolvable:$true] %s26
      %29 = dma.hbm_to_vmem [thread:$0]  %s1, 256, %s27, [#allocation6]
    $region9: #{tpu_custom_call.1} parent=1 // pred_fallthru
      _
    // Predicated region
    $region10: #{tpu_custom_call.1} parent=1 // pred_check
      _
    $region11: #{tpu_custom_call.1} parent=1 // pred_check_branch
      %31 = sbr.rel (0) target = $region13
    $region12: #{tpu_custom_call.1} parent=1 // pred_region
      %32 = dma.done [#allocation3], 32
    $region13: #{tpu_custom_call.1} parent=1 // pred_fallthru
      _
    // Predicated region
    $region14: #{tpu_custom_call.1} parent=1 // pred_check
      _
    $region15: #{tpu_custom_call.1} parent=1 // pred_check_branch
      %34 = sbr.rel (0) target = $region17
    $region16: #{tpu_custom_call.1} parent=1 // pred_region
      %35 = dma.done [#allocation6], 256
    $region17: #{tpu_custom_call.1} parent=1 // pred_fallthru
      _
    %v36 = vld [vmem:[#allocation5] sm:$0xff]
    %v37 = vld [vmem:[#allocation5 + $0x8] sm:$0xff]
    %v38 = vld [vmem:[#allocation2] sm:$0x3]
    %v40 = vlaneseq
    %v41 = vshrl.u32 %v40, 7
    %v42 = vsub.s32 0, %v41
    %v43 = vrot.slane %v38, %v42
    %v44 = vlaneseq
    %v45 = vshrl.u32 %v44, 7
    %v46 = vsub.s32 1, %v45
    %v47 = vrot.slane %v38, %v46
    %v50 = vmul.f32 %v43, %v36
    %v51 = vmul.f32 %v47, %v37
    %v52 = vsub.f32 1.0, %v36
    %v53 = vsub.f32 1.0, %v37
    %v54 = vmul.f32 %v50, %v52
    %v55 = vmul.f32 %v51, %v53
    %56 = vst [vmem:[#allocation7] sm:$0xff] %v54
    %57 = vst [vmem:[#allocation7 + $0x8] sm:$0xff] %v55
    // Predicated region
    $region18: #{tpu_custom_call.1} parent=1 // pred_check
      _
    $region19: #{tpu_custom_call.1} parent=1 // pred_check_branch
      %59 = sbr.rel (0) target = $region21
    $region20: #{tpu_custom_call.1} parent=1 // pred_region
      %s61 = ssub.s32 256, 256
      %62 = vsyncadd [#allocation4], %s61
      %s64 = sshll.u32 [#allocation7], 4
      %s65 = int_to_ptr.vmem [resolvable:$true] %s64
      %67 = dma.vmem_to_hbm [thread:$0]  %s65, 256, %s2, [#allocation4]
    $region21: #{tpu_custom_call.1} parent=1 // pred_fallthru
      _
    // Predicated region
    $region22: #{tpu_custom_call.1} parent=1 // pred_check
      _
    $region23: #{tpu_custom_call.1} parent=1 // pred_check_branch
      %69 = sbr.rel (0) target = $region25
    $region24: #{tpu_custom_call.1} parent=1 // pred_region
      %70 = dma.done [#allocation4], 256
    $region25: #{tpu_custom_call.1} parent=1 // pred_fallthru
      _
    %71 = vsyncpa [#allocation3], 1
    %72 = vsyncpa [#allocation6], 1
    %73 = vsyncpa [#allocation4], 1

</llo_original>
